<compile_context>
chip_gen: v7x
topology: tpu7x:2x2x1
jax: 0.10.0
libtpu: 0.0.40
codegen_flags: <defaults>
</compile_context>

<pallas_src>
from itertools import combinations

import numpy as np
import jax
import jax.numpy as jnp
from jax.experimental import pallas as pl
from jax.experimental.pallas import tpu as pltpu


# --------------------------- host-side constants ---------------------------- #

def _ry_np(theta):
    c, s = np.cos(theta / 2.0), np.sin(theta / 2.0)
    return np.array([[c, -s], [s, c]], dtype=np.float64)


def _ry_on_wire_np(theta, wire, n_qubits):
    left = np.eye(2 ** wire)
    right = np.eye(2 ** (n_qubits - 1 - wire))
    return np.kron(np.kron(left, _ry_np(theta)), right)


def _cnot_np(control, target, n_qubits):
    dim = 2 ** n_qubits
    idx = np.arange(dim)
    cbit = (idx >> (n_qubits - 1 - control)) & 1
    new = idx ^ (cbit << (n_qubits - 1 - target))
    m = np.zeros((dim, dim), dtype=np.float64)
    m[new, idx] = 1.0
    return m


def build_circuit_unitary_np(weights, n_qubits, n_blocks):
    """Unitary of the weight-dependent part of real_amplitudes (after H/RY(x))."""
    dim = 2 ** n_qubits
    u = np.eye(dim, dtype=np.float64)
    for b in range(n_blocks):
        for (c, t) in combinations(range(n_qubits), 2):
            u = _cnot_np(c, t, n_qubits) @ u
        for j in range(n_qubits):
            u = _ry_on_wire_np(weights[b * n_qubits + j], j, n_qubits) @ u
    return u


def build_zsign_np(n_qubits):
    """zsign[s, i] = +1 if bit i of basis state s is 0 else -1 (wire 0 = MSB)."""
    dim = 2 ** n_qubits
    idx = np.arange(dim)
    z = np.zeros((dim, n_qubits), dtype=np.float64)
    for i in range(n_qubits):
        bit = (idx >> (n_qubits - 1 - i)) & 1
        z[:, i] = 1.0 - 2.0 * bit
    return z


def build_constants(weights_np, n_qubits, n_blocks, num_circuits):
    """Build the weight-dependent kernel constants ONCE (outside the hot path).

    Returns:
      utbd : (nc*dim, nc*dim) block-diagonal, block ci = U_ci^T
      zbd  : (nc*dim, nc*n_qubits) block-diagonal, block ci = zsign
      bits : (n_qubits, dim) f32, bits[q, s] = bit q of basis state s (wire0=MSB)
    """
    dim = 2 ** n_qubits
    K = num_circuits * dim
    D = num_circuits * n_qubits
    utbd = np.zeros((K, K), dtype=np.float64)
    zbd = np.zeros((K, D), dtype=np.float64)
    z = build_zsign_np(n_qubits)
    for ci in range(num_circuits):
        u = build_circuit_unitary_np(np.asarray(weights_np[ci]), n_qubits, n_blocks)
        utbd[ci * dim:(ci + 1) * dim, ci * dim:(ci + 1) * dim] = u.T
        zbd[ci * dim:(ci + 1) * dim, ci * n_qubits:(ci + 1) * n_qubits] = z
    idx = np.arange(dim)
    bits = np.zeros((n_qubits, dim), dtype=np.float64)
    for q in range(n_qubits):
        bits[q, :] = (idx >> (n_qubits - 1 - q)) & 1
    return (jnp.asarray(utbd, dtype=jnp.float32),
            jnp.asarray(zbd, dtype=jnp.float32),
            jnp.asarray(bits, dtype=jnp.float32))


# ------------------------------- Pallas kernel ------------------------------ #

def _make_kernel(n_qubits, num_circuits):
    dim = 2 ** n_qubits
    inv_sqrt2 = float(1.0 / np.sqrt(2.0))

    def kernel(x_ref, bit_ref, ut_ref, z_ref, o_ref, psi0_scr):
        x = x_ref[...]                           # (TB, D)
        half = x * 0.5
        c = jnp.cos(half)
        s = jnp.sin(half)
        a0 = (c - s) * inv_sqrt2                 # |0> amplitude of RY(x) H |0>
        delta = (2.0 * inv_sqrt2) * s            # a1 - a0
        bits = bit_ref[...]                      # (n_qubits, dim), hoisted const

        # Build the lane-packed product states (TB, nc*dim) into VMEM scratch.
        for ci in range(num_circuits):           # static unroll; nc is small
            lo = ci * n_qubits
            psi0 = None
            for q in range(n_qubits):
                amp = (a0[:, lo + q:lo + q + 1]
                       + delta[:, lo + q:lo + q + 1] * bits[q:q + 1, :])  # (TB, dim)
                psi0 = amp if psi0 is None else psi0 * amp
            psi0_scr[:, ci * dim:(ci + 1) * dim] = psi0

        # One fused pair of MXU matmuls for ALL circuits (block-diagonal
        # operands) and a single full-tile (TB, D) output store.
        psi = jnp.dot(psi0_scr[...], ut_ref[...],
                      preferred_element_type=jnp.float32)          # (TB, nc*dim)
        probs = psi * psi
        o_ref[...] = jnp.dot(probs, z_ref[...],
                             preferred_element_type=jnp.float32)   # (TB, D)

    return kernel


def _round_up(a, b):
    return ((a + b - 1) // b) * b


def quantum_layer_forward(x, utbd, zbd, bits, n_qubits, num_circuits):
    """x: (B, D) with D = num_circuits * n_qubits; constants from build_constants."""
    B, D = x.shape
    if D != num_circuits * n_qubits:
        raise ValueError("input size must equal num_circuits * n_qubits")
    dim = 2 ** n_qubits
    K = num_circuits * dim

    # Batch tiling: multiple of 8 sublanes, up to 128 rows per grid step.
    TILE_B = min(128, _round_up(max(B, 1), 8))
    Bp = _round_up(B, TILE_B)
    xp = x.astype(jnp.float32)
    if Bp != B:
        xp = jnp.pad(xp, ((0, Bp - B), (0, 0)))

    kernel = _make_kernel(n_qubits, num_circuits)
    out = pl.pallas_call(
        kernel,
        out_shape=jax.ShapeDtypeStruct((Bp, D), jnp.float32),
        grid=(Bp // TILE_B,),
        in_specs=[
            pl.BlockSpec((TILE_B, D), lambda b: (b, 0)),      # x batch tile
            pl.BlockSpec((n_qubits, dim), lambda b: (0, 0)),  # bit masks
            pl.BlockSpec((K, K), lambda b: (0, 0)),           # block-diag U^T
            pl.BlockSpec((K, D), lambda b: (0, 0)),           # block-diag Zsign
        ],
        out_specs=pl.BlockSpec((TILE_B, D), lambda b: (b, 0)),
        scratch_shapes=[pltpu.VMEM((TILE_B, K), jnp.float32)],
        compiler_params=pltpu.CompilerParams(
            dimension_semantics=("parallel",)),               # megacore on v7x
        # TODO(synk): for large n_qubits/num_circuits, add a circuit grid axis
        # to stream one U_c^T per step and set vmem_limit_bytes (v7x 64 MiB VMEM);
        # at these sizes the full block-diagonal operands are a few KiB.
    )(xp, bits, utbd, zbd)
    return out[:B]


# ----------------------------- numpy reference ------------------------------ #

def quantum_layer_reference(x_np, weights_np, n_qubits, n_blocks):
    B, D = x_np.shape
    num_circuits = D // n_qubits
    dim = 2 ** n_qubits
    z = build_zsign_np(n_qubits)
    outs = []
    for ci in range(num_circuits):
        xc = x_np[:, ci * n_qubits:(ci + 1) * n_qubits]
        a0 = (np.cos(xc / 2.0) - np.sin(xc / 2.0)) / np.sqrt(2.0)
        a1 = (np.cos(xc / 2.0) + np.sin(xc / 2.0)) / np.sqrt(2.0)
        psi0 = np.ones((B, 1))
        for q in range(n_qubits):
            bit = (np.arange(dim) >> (n_qubits - 1 - q)) & 1
            psi0 = psi0 * np.where(bit[None, :] == 1, a1[:, q:q + 1], a0[:, q:q + 1])
        u = build_circuit_unitary_np(np.asarray(weights_np[ci]), n_qubits, n_blocks)
        psi = psi0 @ u.T
        outs.append((psi * psi) @ z)
    return np.concatenate(outs, axis=1)


# ------------------------------------ main ---------------------------------- #

if __name__ == "__main__":
    n_qubits, n_blocks = 4, 2
    input_size, batch = 8, 2          # num_circuits = input_size // n_qubits = 2
    num_circuits = input_size // n_qubits

    key = jax.random.PRNGKey(0)
    kx, kw = jax.random.split(key)
    x = jax.random.uniform(kx, (batch, input_size), dtype=jnp.float32)
    # TorchLayer-style deterministic init: uniform in [0, 2*pi)
    weights = jax.random.uniform(kw, (num_circuits, n_blocks * n_qubits),
                                 minval=0.0, maxval=2.0 * np.pi, dtype=jnp.float32)

    # Weight-dependent constants are built once, outside the per-call hot path.
    w_np = np.asarray(weights, dtype=np.float64)
    utbd, zbd, bits = build_constants(w_np, n_qubits, n_blocks, num_circuits)

    out = quantum_layer_forward(x, utbd, zbd, bits, n_qubits, num_circuits)
    out = jax.block_until_ready(out)

    ref = quantum_layer_reference(np.asarray(x, dtype=np.float64), w_np,
                                  n_qubits, n_blocks)
    assert out.shape == (batch, input_size)
    assert np.allclose(np.asarray(out), ref.astype(np.float32),
                       atol=1e-5, rtol=1e-5)
    print("KERNEL_OK")
</pallas_src>

<mosaic_0001>
module attributes {stable_mosaic.version = 11 : i64} {
  func.func @kernel(%arg0: i32, %arg1: memref<8x8xf32, #tpu.memory_space<vmem>>, %arg2: memref<4x16xf32, #tpu.memory_space<vmem>>, %arg3: memref<32x32xf32, #tpu.memory_space<vmem>>, %arg4: memref<32x8xf32, #tpu.memory_space<vmem>>, %arg5: memref<8x8xf32, #tpu.memory_space<vmem>>, %arg6: memref<8x32xf32, #tpu.memory_space<vmem>>) attributes {dimension_semantics = [#tpu.dimension_semantics<parallel>], iteration_bounds = array<i64: 1>, scalar_prefetch = 0 : i64, scratch_operands = 1 : i64, tpu.core_type = #tpu.core_type<tc>, window_params = [{transform_indices = @transform_0, window_bounds = array<i64: 8, 8>}, {pipeline_mode = #tpu.pipeline_mode<synchronous>, transform_indices = @transform_1, window_bounds = array<i64: 4, 16>}, {pipeline_mode = #tpu.pipeline_mode<synchronous>, transform_indices = @transform_2, window_bounds = array<i64: 32, 32>}, {pipeline_mode = #tpu.pipeline_mode<synchronous>, transform_indices = @transform_3, window_bounds = array<i64: 32, 8>}, {transform_indices = @transform_4, window_bounds = array<i64: 8, 8>}]} {
    %c0 = arith.constant 0 : index
    %c0_0 = arith.constant 0 : index
    %0 = vector.load %arg1[%c0, %c0_0] : memref<8x8xf32, #tpu.memory_space<vmem>>, vector<8x8xf32>
    %cst = arith.constant 5.000000e-01 : f32
    %1 = vector.broadcast %cst : f32 to vector<8x8xf32>
    %2 = arith.mulf %0, %1 : vector<8x8xf32>
    %3 = math.cos %2 : vector<8x8xf32>
    %4 = math.sin %2 : vector<8x8xf32>
    %5 = arith.subf %3, %4 : vector<8x8xf32>
    %cst_1 = arith.constant 0.707106769 : f32
    %6 = vector.broadcast %cst_1 : f32 to vector<8x8xf32>
    %7 = arith.mulf %5, %6 : vector<8x8xf32>
    %cst_2 = arith.constant 1.41421354 : f32
    %8 = vector.broadcast %cst_2 : f32 to vector<8x8xf32>
    %9 = arith.mulf %8, %4 : vector<8x8xf32>
    %c0_3 = arith.constant 0 : index
    %c0_4 = arith.constant 0 : index
    %10 = vector.load %arg2[%c0_3, %c0_4] : memref<4x16xf32, #tpu.memory_space<vmem>>, vector<4x16xf32>
    %11 = vector.extract_strided_slice %7 {offsets = [0, 0], sizes = [8, 1], strides = [1, 1]} : vector<8x8xf32> to vector<8x1xf32>
    %12 = vector.extract_strided_slice %9 {offsets = [0, 0], sizes = [8, 1], strides = [1, 1]} : vector<8x8xf32> to vector<8x1xf32>
    %13 = vector.extract_strided_slice %10 {offsets = [0, 0], sizes = [1, 16], strides = [1, 1]} : vector<4x16xf32> to vector<1x16xf32>
    %14 = vector.broadcast %12 : vector<8x1xf32> to vector<8x16xf32>
    %15 = vector.broadcast %13 : vector<1x16xf32> to vector<8x16xf32>
    %16 = arith.mulf %14, %15 : vector<8x16xf32>
    %17 = vector.broadcast %11 : vector<8x1xf32> to vector<8x16xf32>
    %18 = arith.addf %17, %16 : vector<8x16xf32>
    %19 = vector.extract_strided_slice %7 {offsets = [0, 1], sizes = [8, 1], strides = [1, 1]} : vector<8x8xf32> to vector<8x1xf32>
    %20 = vector.extract_strided_slice %9 {offsets = [0, 1], sizes = [8, 1], strides = [1, 1]} : vector<8x8xf32> to vector<8x1xf32>
    %21 = vector.extract_strided_slice %10 {offsets = [1, 0], sizes = [1, 16], strides = [1, 1]} : vector<4x16xf32> to vector<1x16xf32>
    %22 = vector.broadcast %20 : vector<8x1xf32> to vector<8x16xf32>
    %23 = vector.broadcast %21 : vector<1x16xf32> to vector<8x16xf32>
    %24 = arith.mulf %22, %23 : vector<8x16xf32>
    %25 = vector.broadcast %19 : vector<8x1xf32> to vector<8x16xf32>
    %26 = arith.addf %25, %24 : vector<8x16xf32>
    %27 = arith.mulf %18, %26 : vector<8x16xf32>
    %28 = vector.extract_strided_slice %7 {offsets = [0, 2], sizes = [8, 1], strides = [1, 1]} : vector<8x8xf32> to vector<8x1xf32>
    %29 = vector.extract_strided_slice %9 {offsets = [0, 2], sizes = [8, 1], strides = [1, 1]} : vector<8x8xf32> to vector<8x1xf32>
    %30 = vector.extract_strided_slice %10 {offsets = [2, 0], sizes = [1, 16], strides = [1, 1]} : vector<4x16xf32> to vector<1x16xf32>
    %31 = vector.broadcast %29 : vector<8x1xf32> to vector<8x16xf32>
    %32 = vector.broadcast %30 : vector<1x16xf32> to vector<8x16xf32>
    %33 = arith.mulf %31, %32 : vector<8x16xf32>
    %34 = vector.broadcast %28 : vector<8x1xf32> to vector<8x16xf32>
    %35 = arith.addf %34, %33 : vector<8x16xf32>
    %36 = arith.mulf %27, %35 : vector<8x16xf32>
    %37 = vector.extract_strided_slice %7 {offsets = [0, 3], sizes = [8, 1], strides = [1, 1]} : vector<8x8xf32> to vector<8x1xf32>
    %38 = vector.extract_strided_slice %9 {offsets = [0, 3], sizes = [8, 1], strides = [1, 1]} : vector<8x8xf32> to vector<8x1xf32>
    %39 = vector.extract_strided_slice %10 {offsets = [3, 0], sizes = [1, 16], strides = [1, 1]} : vector<4x16xf32> to vector<1x16xf32>
    %40 = vector.broadcast %38 : vector<8x1xf32> to vector<8x16xf32>
    %41 = vector.broadcast %39 : vector<1x16xf32> to vector<8x16xf32>
    %42 = arith.mulf %40, %41 : vector<8x16xf32>
    %43 = vector.broadcast %37 : vector<8x1xf32> to vector<8x16xf32>
    %44 = arith.addf %43, %42 : vector<8x16xf32>
    %45 = arith.mulf %36, %44 : vector<8x16xf32>
    %c0_5 = arith.constant 0 : index
    %c0_6 = arith.constant 0 : index
    %46 = vector.load %arg6[%c0_5, %c0_6] : memref<8x32xf32, #tpu.memory_space<vmem>>, vector<8x16xf32>
    tpu.vector_store %arg6[%c0_5, %c0_6], %45 {strides = array<i32>} : memref<8x32xf32, #tpu.memory_space<vmem>>, vector<8x16xf32>,
    %47 = vector.extract_strided_slice %7 {offsets = [0, 4], sizes = [8, 1], strides = [1, 1]} : vector<8x8xf32> to vector<8x1xf32>
    %48 = vector.extract_strided_slice %9 {offsets = [0, 4], sizes = [8, 1], strides = [1, 1]} : vector<8x8xf32> to vector<8x1xf32>
    %49 = vector.extract_strided_slice %10 {offsets = [0, 0], sizes = [1, 16], strides = [1, 1]} : vector<4x16xf32> to vector<1x16xf32>
    %50 = vector.broadcast %48 : vector<8x1xf32> to vector<8x16xf32>
    %51 = vector.broadcast %49 : vector<1x16xf32> to vector<8x16xf32>
    %52 = arith.mulf %50, %51 : vector<8x16xf32>
    %53 = vector.broadcast %47 : vector<8x1xf32> to vector<8x16xf32>
    %54 = arith.addf %53, %52 : vector<8x16xf32>
    %55 = vector.extract_strided_slice %7 {offsets = [0, 5], sizes = [8, 1], strides = [1, 1]} : vector<8x8xf32> to vector<8x1xf32>
    %56 = vector.extract_strided_slice %9 {offsets = [0, 5], sizes = [8, 1], strides = [1, 1]} : vector<8x8xf32> to vector<8x1xf32>
    %57 = vector.extract_strided_slice %10 {offsets = [1, 0], sizes = [1, 16], strides = [1, 1]} : vector<4x16xf32> to vector<1x16xf32>
    %58 = vector.broadcast %56 : vector<8x1xf32> to vector<8x16xf32>
    %59 = vector.broadcast %57 : vector<1x16xf32> to vector<8x16xf32>
    %60 = arith.mulf %58, %59 : vector<8x16xf32>
    %61 = vector.broadcast %55 : vector<8x1xf32> to vector<8x16xf32>
    %62 = arith.addf %61, %60 : vector<8x16xf32>
    %63 = arith.mulf %54, %62 : vector<8x16xf32>
    %64 = vector.extract_strided_slice %7 {offsets = [0, 6], sizes = [8, 1], strides = [1, 1]} : vector<8x8xf32> to vector<8x1xf32>
    %65 = vector.extract_strided_slice %9 {offsets = [0, 6], sizes = [8, 1], strides = [1, 1]} : vector<8x8xf32> to vector<8x1xf32>
    %66 = vector.extract_strided_slice %10 {offsets = [2, 0], sizes = [1, 16], strides = [1, 1]} : vector<4x16xf32> to vector<1x16xf32>
    %67 = vector.broadcast %65 : vector<8x1xf32> to vector<8x16xf32>
    %68 = vector.broadcast %66 : vector<1x16xf32> to vector<8x16xf32>
    %69 = arith.mulf %67, %68 : vector<8x16xf32>
    %70 = vector.broadcast %64 : vector<8x1xf32> to vector<8x16xf32>
    %71 = arith.addf %70, %69 : vector<8x16xf32>
    %72 = arith.mulf %63, %71 : vector<8x16xf32>
    %73 = vector.extract_strided_slice %7 {offsets = [0, 7], sizes = [8, 1], strides = [1, 1]} : vector<8x8xf32> to vector<8x1xf32>
    %74 = vector.extract_strided_slice %9 {offsets = [0, 7], sizes = [8, 1], strides = [1, 1]} : vector<8x8xf32> to vector<8x1xf32>
    %75 = vector.extract_strided_slice %10 {offsets = [3, 0], sizes = [1, 16], strides = [1, 1]} : vector<4x16xf32> to vector<1x16xf32>
    %76 = vector.broadcast %74 : vector<8x1xf32> to vector<8x16xf32>
    %77 = vector.broadcast %75 : vector<1x16xf32> to vector<8x16xf32>
    %78 = arith.mulf %76, %77 : vector<8x16xf32>
    %79 = vector.broadcast %73 : vector<8x1xf32> to vector<8x16xf32>
    %80 = arith.addf %79, %78 : vector<8x16xf32>
    %81 = arith.mulf %72, %80 : vector<8x16xf32>
    %c0_7 = arith.constant 0 : index
    %c16 = arith.constant 16 : index
    %82 = vector.load %arg6[%c0_7, %c16] : memref<8x32xf32, #tpu.memory_space<vmem>>, vector<8x16xf32>
    tpu.vector_store %arg6[%c0_7, %c16], %81 {strides = array<i32>} : memref<8x32xf32, #tpu.memory_space<vmem>>, vector<8x16xf32>,
    %c0_8 = arith.constant 0 : index
    %c0_9 = arith.constant 0 : index
    %83 = vector.load %arg6[%c0_8, %c0_9] : memref<8x32xf32, #tpu.memory_space<vmem>>, vector<8x32xf32>
    %c0_10 = arith.constant 0 : index
    %c0_11 = arith.constant 0 : index
    %84 = vector.load %arg3[%c0_10, %c0_11] : memref<32x32xf32, #tpu.memory_space<vmem>>, vector<32x32xf32>
    %cst_12 = arith.constant dense<0.000000e+00> : vector<8x32xf32>
    %85 = tpu.matmul %83, %84, %cst_12 {dimension_numbers = #tpu.dot_dimension_numbers<[1], [0], [0], [1], [0, 0, 1, 1], [], []>} : vector<8x32xf32>, vector<32x32xf32>, vector<8x32xf32> -> vector<8x32xf32>
    %86 = arith.mulf %85, %85 : vector<8x32xf32>
    %c0_13 = arith.constant 0 : index
    %c0_14 = arith.constant 0 : index
    %87 = vector.load %arg4[%c0_13, %c0_14] : memref<32x8xf32, #tpu.memory_space<vmem>>, vector<32x8xf32>
    %cst_15 = arith.constant dense<0.000000e+00> : vector<8x8xf32>
    %88 = tpu.matmul %86, %87, %cst_15 {dimension_numbers = #tpu.dot_dimension_numbers<[1], [0], [0], [1], [0, 0, 1, 1], [], []>} : vector<8x32xf32>, vector<32x8xf32>, vector<8x8xf32> -> vector<8x8xf32>
    %c0_16 = arith.constant 0 : index
    %c0_17 = arith.constant 0 : index
    %89 = vector.load %arg5[%c0_16, %c0_17] : memref<8x8xf32, #tpu.memory_space<vmem>>, vector<8x8xf32>
    tpu.vector_store %arg5[%c0_16, %c0_17], %88 {strides = array<i32>} : memref<8x8xf32, #tpu.memory_space<vmem>>, vector<8x8xf32>,
    return
  }
  func.func @transform_0(%arg0: i32) -> (i32, i32) {
    %c0_i32 = arith.constant 0 : i32
    %c0_i32_0 = arith.constant 0 : i32
    return %arg0, %c0_i32 : i32, i32
  }
  func.func @transform_1(%arg0: i32) -> (i32, i32) {
    %c0_i32 = arith.constant 0 : i32
    %c0_i32_0 = arith.constant 0 : i32
    %c0_i32_1 = arith.constant 0 : i32
    return %c0_i32, %c0_i32_0 : i32, i32
  }
  func.func @transform_2(%arg0: i32) -> (i32, i32) {
    %c0_i32 = arith.constant 0 : i32
    %c0_i32_0 = arith.constant 0 : i32
    %c0_i32_1 = arith.constant 0 : i32
    return %c0_i32, %c0_i32_0 : i32, i32
  }
  func.func @transform_3(%arg0: i32) -> (i32, i32) {
    %c0_i32 = arith.constant 0 : i32
    %c0_i32_0 = arith.constant 0 : i32
    %c0_i32_1 = arith.constant 0 : i32
    return %c0_i32, %c0_i32_0 : i32, i32
  }
  func.func @transform_4(%arg0: i32) -> (i32, i32) {
    %c0_i32 = arith.constant 0 : i32
    %c0_i32_0 = arith.constant 0 : i32
    return %arg0, %c0_i32 : i32, i32
  }
}

</mosaic_0001>

<llo_original>
// kernel: tpu_custom_call.1
$region0: #{tpu_custom_call.1}
  #allocation0 [shape = 'u32[]', space=smem, size = 0x4, offset = 0x4, fixed_abs, tag = 'smem constant byte address 0x4 - core index']
  #allocation1 [shape = 'u32[144,128]{1,0:T(1,128)}', space=vmem, size = 0x12000, scoped, tag = 'internal scratch']
  #allocation2 [shape = 'f32[8,32]{1,0:T(8,128)}', space=vmem, size = 0x1000, scoped, tag = 'scratch operand']
  %s0 = inlined_call_operand.vmem [shape: f32[8,8], index: 0, kind: input, shape index: {}]
  %s1 = inlined_call_operand.hbm [shape: f32[4,16], index: 1, kind: input, shape index: {}]
  %s2 = inlined_call_operand.vmem [shape: f32[32,32], index: 2, kind: input, shape index: {}]
  %s3 = inlined_call_operand.vmem [shape: f32[32,8], index: 3, kind: input, shape index: {}]
  %s4 = inlined_call_operand.hbm [shape: f32[8,8], index: 4, kind: output, shape index: {}]
  %s5 = sld [smem:[#allocation0]]
  $region30: #{tpu_custom_call.1} parent=0
    _
  %s7 = ssub.s32 1, %s5
  %s8 = scalar_select 0, %s7, %s5
  $region1: #{tpu_custom_call.1} parent=0
    #allocation3 [shape = 'u8[2048]{0}', space=vmem, size = 0x800, scoped, tag = 'input window, operand 1, single buffered']
    #allocation4 [shape = 's32[1]{0}', space=sflag, size = 0x4, scoped, tag = 'scoped memory for tpu_custom_call.1']
    #allocation5 [shape = 's32[1]{0}', space=sflag, size = 0x4, scoped, tag = 'scoped memory for tpu_custom_call.1']
    #allocation6 [shape = 'u8[4096]{0}', space=vmem, size = 0x1000, scoped, tag = 'output window, operand 0, single buffered']
    %9 = vsyncpa [#allocation4], 0
    %10 = vsyncpa [#allocation5], 0
    // Predicated region
    $region2: #{tpu_custom_call.1} parent=1 // pred_check
      _
    $region3: #{tpu_custom_call.1} parent=1 // pred_check_branch
      %12 = sbr.rel (0) target = $region5
    $region4: #{tpu_custom_call.1} parent=1 // pred_region
      _
    $region5: #{tpu_custom_call.1} parent=1 // pred_fallthru
      _
    // Predicated region
    $region6: #{tpu_custom_call.1} parent=1 // pred_check
      _
    $region7: #{tpu_custom_call.1} parent=1 // pred_check_branch
      %14 = sbr.rel (0) target = $region9
    $region8: #{tpu_custom_call.1} parent=1 // pred_region
      %s16 = ssub.s32 64, 64
      %17 = vsyncadd [#allocation4], %s16
      %s19 = sshll.u32 [#allocation3], 4
      %s20 = int_to_ptr.vmem [resolvable:$true] %s19
      %22 = dma.hbm_to_vmem [thread:$0]  %s1, 64, %s20, [#allocation4]
    $region9: #{tpu_custom_call.1} parent=1 // pred_fallthru
      _
    // Predicated region
    $region10: #{tpu_custom_call.1} parent=1 // pred_check
      _
    $region11: #{tpu_custom_call.1} parent=1 // pred_check_branch
      %24 = sbr.rel (0) target = $region13
    $region12: #{tpu_custom_call.1} parent=1 // pred_region
      _
    $region13: #{tpu_custom_call.1} parent=1 // pred_fallthru
      _
    // Predicated region
    $region14: #{tpu_custom_call.1} parent=1 // pred_check
      _
    $region15: #{tpu_custom_call.1} parent=1 // pred_check_branch
      %26 = sbr.rel (0) target = $region17
    $region16: #{tpu_custom_call.1} parent=1 // pred_region
      _
    $region17: #{tpu_custom_call.1} parent=1 // pred_fallthru
      _
    // Predicated region
    $region18: #{tpu_custom_call.1} parent=1 // pred_check
      _
    $region19: #{tpu_custom_call.1} parent=1 // pred_check_branch
      %28 = sbr.rel (0) target = $region21
    $region20: #{tpu_custom_call.1} parent=1 // pred_region
      %29 = dma.done [#allocation4], 64
    $region21: #{tpu_custom_call.1} parent=1 // pred_fallthru
      _
    %v30 = vld [vmem:[%s0] sm:$0xff]
    %v31 = vmul.f32 %v30, 0.5
    %v32 = vand.u32 2147483647, %v31
    %vm33 = vcmp.le.f32.partialorder %v32, 0.7853982
    %vm34 = vcmp.lt.s32.totalorder %v31, 0
    %v35 = vand.u32 %v31, 2139095040
    %v36 = vshrl.u32 %v35, 23
    %v37 = vsub.s32 %v36, 127
    %v38 = vand.u32 2147483647, %v31
    %v39 = vand.u32 %v38, 8388607
    %v40 = vor.u32 %v39, 8388608
    %v41 = vsub.s32 0, %v40
    %v42 = vadd.s32 %v37, 1
    %vm43 = vcmp.gt.s32.totalorder %v42, 0
    %v44 = vsel %vm43, %v42, 0
    %v45 = vshrl.u32 %v44, 5
    %v46 = vand.u32 %v44, 31
    %v47 = vsub.s32 32, %v46
    %v48 = vshrl.u32 683565275, %v47
    %v49 = vshll.u32 683565275, %v46
    %v50 = vshrl.u32 2475754826, %v47
    %v51 = vor.u32 %v49, %v50
    %v52 = vshll.u32 2475754826, %v46
    %v53 = vshrl.u32 2131351028, %v47
    %v54 = vor.u32 %v52, %v53
    %v55 = vshll.u32 2131351028, %v46
    %v56 = vshrl.u32 2102212464, %v47
    %v57 = vor.u32 %v55, %v56
    %v58 = vshll.u32 2102212464, %v46
    %v59 = vshrl.u32 920167782, %v47
    %v60 = vor.u32 %v58, %v59
    %v61 = vshll.u32 920167782, %v46
    %v62 = vshrl.u32 1326507024, %v47
    %v63 = vor.u32 %v61, %v62
    %vm64 = vcmp.lt.s32.totalorder %v45, 1
    %vm65 = vcmp.lt.s32.totalorder %v45, 2
    %vm66 = vcmp.lt.s32.totalorder %v45, 3
    %vm67 = vcmp.lt.s32.totalorder %v45, 4
    %v68 = vsel %vm64, %v48, %v51
    %v69 = vsel %vm67, %v57, 2102212464
    %v70 = vsel %vm66, %v54, %v69
    %v71 = vsel %vm65, %v68, %v70
    %v72 = vsel %vm64, %v51, %v54
    %v73 = vsel %vm67, %v60, 920167782
    %v74 = vsel %vm66, %v57, %v73
    %v75 = vsel %vm65, %v72, %v74
    %v76 = vsel %vm64, %v54, %v57
    %v77 = vsel %vm67, %v63, 1326507024
    %v78 = vsel %vm66, %v60, %v77
    %v79 = vsel %vm65, %v76, %v78
    %v80 = vshll.u32 %v40, 8
    %v81 = vmul.u32.u64.compose %v80, %v79
    %v82 = vextract.low.u32 %v81
    %v83 = vextract.high.u32 %v81
    %v84 = vmul.u32.u64.compose %v80, %v75
    %v85 = vextract.low.u32 %v84
    %v86 = vextract.high.u32 %v84
    %v87 = vmul.u32 %v80, %v71
    %v88 = vadd.s32 %v83, %v85
    %vm89 = vc.u32 %v83, %v85
    %v90 = vadd.s32 %v86, 1
    %v91 = vsel %vm89, %v90, %v86
    %v92 = vadd.s32 %v87, %v91
    %v93 = vadd.s32 %v92, 536870912
    %v94 = vshrl.u32 %v93, 30
    %v95 = vshll.u32 %v94, 30
    %v96 = vsub.s32 %v92, %v95
    %vm97 = vcmp.lt.s32.totalorder %v96, 0
    %v98 = vsub.s32 0, %v96
    %v99 = vsel %vm97, %v98, %v96
    %v100 = vclz %v99
    %v101 = vsub.s32 %v100, 2
    %vm102 = vcmp.gt.s32.totalorder 0, %v101
    %v103 = vsel %vm102, 0, %v101
    %v104 = vsub.s32 32, %v103
    %v105 = vshll.u32 %v96, %v103
    %v106 = vshrl.u32 %v88, %v104
    %v107 = vor.u32 %v105, %v106
    %v108 = vsub.s32 4294967266, %v103
    %v109 = vadd.s32 %v108, 127
    %v110 = vshll.u32 %v109, 23
    %v111 = vor.u32 4788187, %v110
    %v112 = vand.u32 2147483647, %v111
    %v114 = vcvt.s32.f32 %v107
    %v115 = vmul.f32 %v114, %v112
    %v116 = vxor.u32 %v115, 2147483648
    %v117 = vsel %vm34, %v116, %v115
    %v118 = vsub.s32 4, %v94
    %v119 = vsel %vm34, %v118, %v94
    %v120 = vsel %vm33, %v31, %v117
    %v121 = vsel %vm33, 0, %v119
    %v122 = vcosq.f32.pop %v120
    %v123 = vsinq.f32.pop %v120
    %vm124 = vweird.f32 %v31
    %v125 = vand.u32 %v121, 3
    %vm126 = vcmp.lt.s32.totalorder %v125, 2
    %vm127 = vcmp.eq.s32.totalorder %v125, 0
    %v128 = vxor.u32 %v123, 2147483648
    %v129 = vsel %vm127, %v122, %v128
    %vm130 = vcmp.eq.s32.totalorder %v125, 2
    %v131 = vxor.u32 %v122, 2147483648
    %v132 = vsel %vm130, %v131, %v123
    %v133 = vsel %vm126, %v129, %v132
    %v134 = vsel %vm124, nan, %v133
    %v135 = vand.u32 2147483647, %v31
    %vm136 = vcmp.le.f32.partialorder %v135, 0.7853982
    %vm137 = vcmp.lt.s32.totalorder %v31, 0
    %v138 = vand.u32 %v31, 2139095040
    %v139 = vshrl.u32 %v138, 23
    %v140 = vsub.s32 %v139, 127
    %v141 = vand.u32 2147483647, %v31
    %v142 = vand.u32 %v141, 8388607
    %v143 = vor.u32 %v142, 8388608
    %v144 = vsub.s32 0, %v143
    %v145 = vadd.s32 %v140, 1
    %vm146 = vcmp.gt.s32.totalorder %v145, 0
    %v147 = vsel %vm146, %v145, 0
    %v148 = vshrl.u32 %v147, 5
    %v149 = vand.u32 %v147, 31
    %v150 = vsub.s32 32, %v149
    %v151 = vshrl.u32 683565275, %v150
    %v152 = vshll.u32 683565275, %v149
    %v153 = vshrl.u32 2475754826, %v150
    %v154 = vor.u32 %v152, %v153
    %v155 = vshll.u32 2475754826, %v149
    %v156 = vshrl.u32 2131351028, %v150
    %v157 = vor.u32 %v155, %v156
    %v158 = vshll.u32 2131351028, %v149
    %v159 = vshrl.u32 2102212464, %v150
    %v160 = vor.u32 %v158, %v159
    %v161 = vshll.u32 2102212464, %v149
    %v162 = vshrl.u32 920167782, %v150
    %v163 = vor.u32 %v161, %v162
    %v164 = vshll.u32 920167782, %v149
    %v165 = vshrl.u32 1326507024, %v150
    %v166 = vor.u32 %v164, %v165
    %vm167 = vcmp.lt.s32.totalorder %v148, 1
    %vm168 = vcmp.lt.s32.totalorder %v148, 2
    %vm169 = vcmp.lt.s32.totalorder %v148, 3
    %vm170 = vcmp.lt.s32.totalorder %v148, 4
    %v171 = vsel %vm167, %v151, %v154
    %v172 = vsel %vm170, %v160, 2102212464
    %v173 = vsel %vm169, %v157, %v172
    %v174 = vsel %vm168, %v171, %v173
    %v175 = vsel %vm167, %v154, %v157
    %v176 = vsel %vm170, %v163, 920167782
    %v177 = vsel %vm169, %v160, %v176
    %v178 = vsel %vm168, %v175, %v177
    %v179 = vsel %vm167, %v157, %v160
    %v180 = vsel %vm170, %v166, 1326507024
    %v181 = vsel %vm169, %v163, %v180
    %v182 = vsel %vm168, %v179, %v181
    %v183 = vshll.u32 %v143, 8
    %v184 = vmul.u32.u64.compose %v183, %v182
    %v185 = vextract.low.u32 %v184
    %v186 = vextract.high.u32 %v184
    %v187 = vmul.u32.u64.compose %v183, %v178
    %v188 = vextract.low.u32 %v187
    %v189 = vextract.high.u32 %v187
    %v190 = vmul.u32 %v183, %v174
    %v191 = vadd.s32 %v186, %v188
    %vm192 = vc.u32 %v186, %v188
    %v193 = vadd.s32 %v189, 1
    %v194 = vsel %vm192, %v193, %v189
    %v195 = vadd.s32 %v190, %v194
    %v196 = vadd.s32 %v195, 536870912
    %v197 = vshrl.u32 %v196, 30
    %v198 = vshll.u32 %v197, 30
    %v199 = vsub.s32 %v195, %v198
    %vm200 = vcmp.lt.s32.totalorder %v199, 0
    %v201 = vsub.s32 0, %v199
    %v202 = vsel %vm200, %v201, %v199
    %v203 = vclz %v202
    %v204 = vsub.s32 %v203, 2
    %vm205 = vcmp.gt.s32.totalorder 0, %v204
    %v206 = vsel %vm205, 0, %v204
    %v207 = vsub.s32 32, %v206
    %v208 = vshll.u32 %v199, %v206
    %v209 = vshrl.u32 %v191, %v207
    %v210 = vor.u32 %v208, %v209
    %v211 = vsub.s32 4294967266, %v206
    %v212 = vadd.s32 %v211, 127
    %v213 = vshll.u32 %v212, 23
    %v214 = vor.u32 4788187, %v213
    %v215 = vand.u32 2147483647, %v214
    %v217 = vcvt.s32.f32 %v210
    %v218 = vmul.f32 %v217, %v215
    %v219 = vxor.u32 %v218, 2147483648
    %v220 = vsel %vm137, %v219, %v218
    %v221 = vsub.s32 4, %v197
    %v222 = vsel %vm137, %v221, %v197
    %v223 = vsel %vm136, %v31, %v220
    %v224 = vsel %vm136, 0, %v222
    %v225 = vcosq.f32.pop %v223
    %v226 = vsinq.f32.pop %v223
    %vm227 = vweird.f32 %v31
    %v228 = vadd.s32 %v224, 3
    %v229 = vand.u32 %v228, 3
    %vm230 = vcmp.lt.s32.totalorder %v229, 2
    %vm231 = vcmp.eq.s32.totalorder %v229, 0
    %v232 = vxor.u32 %v226, 2147483648
    %v233 = vsel %vm231, %v225, %v232
    %vm234 = vcmp.eq.s32.totalorder %v229, 2
    %v235 = vxor.u32 %v225, 2147483648
    %v236 = vsel %vm234, %v235, %v226
    %v237 = vsel %vm230, %v233, %v236
    %v238 = vsel %vm227, nan, %v237
    %v239 = vsub.f32 %v134, %v238
    %v240 = vmul.f32 %v239, 0.70710677
    %v241 = vmul.f32 %v238, 1.4142135
    %v242 = vld [vmem:[#allocation3] sm:$0xf]
    %244 = vset.pattern.permute.xlu0 0
    %245 = vperm.xlu0 %244, %v241
    %v246 = vpop.permute.xlu0 %245
    %v248 = vlaneseq
    %v249 = vshrl.u32 %v248, 7
    %v250 = vsub.s32 0, %v249
    %v251 = vrot.slane %v242, %v250
    %v252 = vmul.f32 %v246, %v251
    %254 = vset.pattern.permute.xlu0 0
    %255 = vperm.xlu0 %254, %v240
    %v256 = vpop.permute.xlu0 %255
    %v258 = vadd.f32 %v256, %v252
    %259 = vset.pattern.permute.xlu0 1
    %260 = vperm.xlu0 %259, %v241
    %v261 = vpop.permute.xlu0 %260
    %v263 = vlaneseq
    %v264 = vshrl.u32 %v263, 7
    %v265 = vsub.s32 1, %v264
    %v266 = vrot.slane %v242, %v265
    %v267 = vmul.f32 %v261, %v266
    %268 = vset.pattern.permute.xlu0 1
    %269 = vperm.xlu0 %268, %v240
    %v270 = vpop.permute.xlu0 %269
    %v272 = vadd.f32 %v270, %v267
    %v273 = vmul.f32 %v258, %v272
    %274 = vset.pattern.permute.xlu0 2
    %275 = vperm.xlu0 %274, %v241
    %v276 = vpop.permute.xlu0 %275
    %v278 = vlaneseq
    %v279 = vshrl.u32 %v278, 7
    %v280 = vsub.s32 2, %v279
    %v281 = vrot.slane %v242, %v280
    %v282 = vmul.f32 %v276, %v281
    %283 = vset.pattern.permute.xlu0 2
    %284 = vperm.xlu0 %283, %v240
    %v285 = vpop.permute.xlu0 %284
    %v287 = vadd.f32 %v285, %v282
    %v288 = vmul.f32 %v273, %v287
    %289 = vset.pattern.permute.xlu0 3
    %290 = vperm.xlu0 %289, %v241
    %v291 = vpop.permute.xlu0 %290
    %v293 = vlaneseq
    %v294 = vshrl.u32 %v293, 7
    %v295 = vsub.s32 3, %v294
    %v296 = vrot.slane %v242, %v295
    %v297 = vmul.f32 %v291, %v296
    %298 = vset.pattern.permute.xlu0 3
    %299 = vperm.xlu0 %298, %v240
    %v300 = vpop.permute.xlu0 %299
    %v302 = vadd.f32 %v300, %v297
    %v303 = vmul.f32 %v288, %v302
    %vm304 = vcmask 130048
    %305 = vst.msk [vmem:[#allocation2] sm:$0xff] %vm304, %v303
    %306 = vset.pattern.permute.xlu0 4
    %307 = vperm.xlu0 %306, %v241
    %v308 = vpop.permute.xlu0 %307
    %v310 = vmul.f32 %v308, %v251
    %311 = vset.pattern.permute.xlu0 4
    %312 = vperm.xlu0 %311, %v240
    %v313 = vpop.permute.xlu0 %312
    %v315 = vadd.f32 %v313, %v310
    %316 = vset.pattern.permute.xlu0 5
    %317 = vperm.xlu0 %316, %v241
    %v318 = vpop.permute.xlu0 %317
    %v320 = vmul.f32 %v318, %v266
    %321 = vset.pattern.permute.xlu0 5
    %322 = vperm.xlu0 %321, %v240
    %v323 = vpop.permute.xlu0 %322
    %v325 = vadd.f32 %v323, %v320
    %v326 = vmul.f32 %v315, %v325
    %327 = vset.pattern.permute.xlu0 6
    %328 = vperm.xlu0 %327, %v241
    %v329 = vpop.permute.xlu0 %328
    %v331 = vmul.f32 %v329, %v281
    %332 = vset.pattern.permute.xlu0 6
    %333 = vperm.xlu0 %332, %v240
    %v334 = vpop.permute.xlu0 %333
    %v336 = vadd.f32 %v334, %v331
    %v337 = vmul.f32 %v326, %v336
    %338 = vset.pattern.permute.xlu0 7
    %339 = vperm.xlu0 %338, %v241
    %v340 = vpop.permute.xlu0 %339
    %v342 = vmul.f32 %v340, %v296
    %343 = vset.pattern.permute.xlu0 7
    %344 = vperm.xlu0 %343, %v240
    %v345 = vpop.permute.xlu0 %344
    %v347 = vadd.f32 %v345, %v342
    %v348 = vmul.f32 %v337, %v347
    %350 = vrot.lane.b32.xlu0 %v348, 16
    %v351 = vpop.permute.xlu0 %350
    %vm353 = vcmask 261248
    %354 = vst.msk [vmem:[#allocation2] sm:$0xff] %vm353, %v351
    %v355 = vld [vmem:[#allocation2] sm:$0xff]
    %v356 = vld [vmem:[%s2] sm:$0xff]
    %v357 = vld [vmem:[%s2 + $0x8] sm:$0xff]
    %v358 = vld [vmem:[%s2 + $0x10] sm:$0xff]
    %v359 = vld [vmem:[%s2 + $0x18] sm:$0xff]
    %vm360 = vcmask 261120
    %v362 = vsel %vm360, %v355, 0
    %364 = vmatprep.subr.mxu0 0.0
    %365 = vmatpush1.msra.mxu0 %v356
    %366 = vmatprep.subr.mxu0 0.0
    %367 = vmatpush1.msra.mxu0 %v357
    %368 = vmatprep.subr.mxu0 0.0
    %369 = vmatpush1.msra.mxu0 %v358
    %370 = vmatprep.subr.mxu0 0.0
    %371 = vmatpush1.msra.mxu0 %v359
    %372 = vmatprep.subr.mxu0 0.0
    %373 = vmatpush1.msra.mxu0 0.0
    %374 = vmatprep.subr.mxu0 0.0
    %375 = vmatpush1.msra.mxu0 0.0
    %376 = vmatprep.subr.mxu0 0.0
    %377 = vmatpush1.msra.mxu0 0.0
    %378 = vmatprep.subr.mxu0 0.0
    %379 = vmatpush1.msra.mxu0 0.0
    %380 = vmatprep.subr.mxu0 0.0
    %381 = vmatpush1.msra.mxu0 0.0
    %382 = vmatprep.subr.mxu0 0.0
    %383 = vmatpush1.msra.mxu0 0.0
    %384 = vmatprep.subr.mxu0 0.0
    %385 = vmatpush1.msra.mxu0 0.0
    %386 = vmatprep.subr.mxu0 0.0
    %387 = vmatpush1.msra.mxu0 0.0
    %388 = vmatprep.subr.mxu0 0.0
    %389 = vmatpush1.msra.mxu0 0.0
    %390 = vmatprep.subr.mxu0 0.0
    %391 = vmatpush1.msra.mxu0 0.0
    %392 = vmatprep.subr.mxu0 0.0
    %393 = vmatpush1.msra.mxu0 0.0
    %394 = vmatprep.subr.mxu0 0.0
    %395 = vmatpush1.msra.mxu0 0.0
    %396 = vmatprep.subr.mxu0 0.0
    %397 = vmatpush1.msra.mxu0 0.0
    %398 = vmatprep.subr.mxu0 0.0
    %399 = vmatpush1.msra.mxu0 0.0
    %400 = vmatprep.subr.mxu0 0.0
    %401 = vmatpush1.msra.mxu0 0.0
    %402 = vmatprep.subr.mxu0 0.0
    %403 = vmatpush1.msra.mxu0 0.0
    %404 = vmatprep.subr.mxu0 0.0
    %405 = vmatpush1.msra.mxu0 0.0
    %406 = vmatprep.subr.mxu0 0.0
    %407 = vmatpush1.msra.mxu0 0.0
    %408 = vmatprep.subr.mxu0 0.0
    %409 = vmatpush1.msra.mxu0 0.0
    %410 = vmatprep.subr.mxu0 0.0
    %411 = vmatpush1.msra.mxu0 0.0
    %412 = vmatprep.subr.mxu0 0.0
    %413 = vmatpush1.msra.mxu0 0.0
    %414 = vmatprep.subr.mxu0 0.0
    %415 = vmatpush1.msra.mxu0 0.0
    %416 = vmatprep.subr.mxu0 0.0
    %417 = vmatpush1.msra.mxu0 0.0
    %418 = vmatprep.subr.mxu0 0.0
    %419 = vmatpush1.msra.mxu0 0.0
    %420 = vmatprep.subr.mxu0 0.0
    %421 = vmatpush1.msra.mxu0 0.0
    %422 = vmatprep.subr.mxu0 0.0
    %423 = vmatpush1.msra.mxu0 0.0
    %424 = vmatprep.subr.mxu0 0.0
    %425 = vmatpush1.msra.mxu0 0.0
    %426 = vmatprep.subr.mxu0 0.0
    %427 = vmatpush1.msra.mxu0 0.0
    %428 = vmatprep.mubr.f32.mxu0 0.0
    %429 = vmatmul.mubr.f32.gmra.mrb[0].mxu0 %v362
    %v430 = vpop.f32.mrb[0].mxu0
    %v431 = vadd.f32 0.0, %v430
    %v432 = vpop.f32.mrb[0].mxu0
    %433 = vdwg.mxu0
    %v434 = vmul.f32 %v431, %v431
    %v435 = vld [vmem:[%s3] sm:$0xff]
    %v436 = vld [vmem:[%s3 + $0x8] sm:$0xff]
    %v437 = vld [vmem:[%s3 + $0x10] sm:$0xff]
    %v438 = vld [vmem:[%s3 + $0x18] sm:$0xff]
    %v440 = vsel %vm360, %v434, 0
    %442 = vmatprep.subr.mxu0 0.0
    %443 = vmatpush1.msra.mxu0 %v435
    %444 = vmatprep.subr.mxu0 0.0
    %445 = vmatpush1.msra.mxu0 %v436
    %446 = vmatprep.subr.mxu0 0.0
    %447 = vmatpush1.msra.mxu0 %v437
    %448 = vmatprep.subr.mxu0 0.0
    %449 = vmatpush1.msra.mxu0 %v438
    %450 = vmatprep.subr.mxu0 0.0
    %451 = vmatpush1.msra.mxu0 0.0
    %452 = vmatprep.subr.mxu0 0.0
    %453 = vmatpush1.msra.mxu0 0.0
    %454 = vmatprep.subr.mxu0 0.0
    %455 = vmatpush1.msra.mxu0 0.0
    %456 = vmatprep.subr.mxu0 0.0
    %457 = vmatpush1.msra.mxu0 0.0
    %458 = vmatprep.subr.mxu0 0.0
    %459 = vmatpush1.msra.mxu0 0.0
    %460 = vmatprep.subr.mxu0 0.0
    %461 = vmatpush1.msra.mxu0 0.0
    %462 = vmatprep.subr.mxu0 0.0
    %463 = vmatpush1.msra.mxu0 0.0
    %464 = vmatprep.subr.mxu0 0.0
    %465 = vmatpush1.msra.mxu0 0.0
    %466 = vmatprep.subr.mxu0 0.0
    %467 = vmatpush1.msra.mxu0 0.0
    %468 = vmatprep.subr.mxu0 0.0
    %469 = vmatpush1.msra.mxu0 0.0
    %470 = vmatprep.subr.mxu0 0.0
    %471 = vmatpush1.msra.mxu0 0.0
    %472 = vmatprep.subr.mxu0 0.0
    %473 = vmatpush1.msra.mxu0 0.0
    %474 = vmatprep.subr.mxu0 0.0
    %475 = vmatpush1.msra.mxu0 0.0
    %476 = vmatprep.subr.mxu0 0.0
    %477 = vmatpush1.msra.mxu0 0.0
    %478 = vmatprep.subr.mxu0 0.0
    %479 = vmatpush1.msra.mxu0 0.0
    %480 = vmatprep.subr.mxu0 0.0
    %481 = vmatpush1.msra.mxu0 0.0
    %482 = vmatprep.subr.mxu0 0.0
    %483 = vmatpush1.msra.mxu0 0.0
    %484 = vmatprep.subr.mxu0 0.0
    %485 = vmatpush1.msra.mxu0 0.0
    %486 = vmatprep.subr.mxu0 0.0
    %487 = vmatpush1.msra.mxu0 0.0
    %488 = vmatprep.subr.mxu0 0.0
    %489 = vmatpush1.msra.mxu0 0.0
    %490 = vmatprep.subr.mxu0 0.0
    %491 = vmatpush1.msra.mxu0 0.0
    %492 = vmatprep.subr.mxu0 0.0
    %493 = vmatpush1.msra.mxu0 0.0
    %494 = vmatprep.subr.mxu0 0.0
    %495 = vmatpush1.msra.mxu0 0.0
    %496 = vmatprep.subr.mxu0 0.0
    %497 = vmatpush1.msra.mxu0 0.0
    %498 = vmatprep.subr.mxu0 0.0
    %499 = vmatpush1.msra.mxu0 0.0
    %500 = vmatprep.subr.mxu0 0.0
    %501 = vmatpush1.msra.mxu0 0.0
    %502 = vmatprep.subr.mxu0 0.0
    %503 = vmatpush1.msra.mxu0 0.0
    %504 = vmatprep.subr.mxu0 0.0
    %505 = vmatpush1.msra.mxu0 0.0
    %506 = vmatprep.mubr.f32.mxu0 0.0
    %507 = vmatmul.mubr.f32.gmra.mrb[0].mxu0 %v440
    %v508 = vpop.f32.mrb[0].mxu0
    %v509 = vadd.f32 0.0, %v508
    %v510 = vpop.f32.mrb[0].mxu0
    %511 = vdwg.mxu0
    %vm512 = vcmask 64512
    %513 = vst.msk [vmem:[#allocation6] sm:$0xff] %vm512, %v509
    // Predicated region
    $region22: #{tpu_custom_call.1} parent=1 // pred_check
      _
    $region23: #{tpu_custom_call.1} parent=1 // pred_check_branch
      %515 = sbr.rel (0) target = $region25
    $region24: #{tpu_custom_call.1} parent=1 // pred_region
      %s517 = ssub.s32 128, 128
      %518 = vsyncadd [#allocation5], %s517
      %s520 = sshll.u32 [#allocation6], 4
      %s521 = int_to_ptr.vmem [resolvable:$true] %s520
      %523 = dma.vmem_to_hbm [thread:$0]  %s521, 128, %s4, [#allocation5]
    $region25: #{tpu_custom_call.1} parent=1 // pred_fallthru
      _
    // Predicated region
    $region26: #{tpu_custom_call.1} parent=1 // pred_check
      _
    $region27: #{tpu_custom_call.1} parent=1 // pred_check_branch
      %525 = sbr.rel (0) target = $region29
    $region28: #{tpu_custom_call.1} parent=1 // pred_region
      %526 = dma.done [#allocation5], 128
    $region29: #{tpu_custom_call.1} parent=1 // pred_fallthru
      _
    %527 = vsyncpa [#allocation4], 1
    %528 = vsyncpa [#allocation5], 1

</llo_original>
